<compile_context>
chip_gen: v7x
topology: tpu7x:2x2x1
jax: 0.10.0
libtpu: 0.0.40
codegen_flags: <defaults>
</compile_context>

<pallas_src>
import functools

import jax
import jax.numpy as jnp
from jax import lax
from jax.experimental import pallas as pl
from jax.experimental.pallas import tpu as pltpu


def attention_kernel(enc_ref, dec_ref, dem_ref, load_ref,
                     w1_ref, w2_ref, b12_ref,
                     wa_ref, ba_ref, va_ref, bva_ref,
                     wwt_ref, wct_ref, bwc_ref,
                     vc_ref, bvc_ref,
                     out_ref):
    TB, S, E = enc_ref.shape
    H = w1_ref.shape[1]
    A = wa_ref.shape[1]

    # ---- x_t = W1_encoder(enc) + W2_decoder(dec) + (b1 + b2) ------------------
    enc = enc_ref[...].reshape(TB * S, E)                    # bf16, leading dims collapsed
    dec = dec_ref[...]                                       # bf16 (TB, D)
    x_enc = jnp.dot(enc, w1_ref[...], preferred_element_type=jnp.float32)  # (TB*S, H)
    x_dec = jnp.dot(dec, w2_ref[...], preferred_element_type=jnp.float32)  # (TB, H)
    x_t = x_enc.reshape(TB, S, H) + x_dec.reshape(TB, 1, H) + b12_ref[...]  # (TB,S,H) f32
    x_bf = x_t.reshape(TB * S, H).astype(jnp.bfloat16)

    # ---- u_t = Va(tanh(Wa(x_t)))  (Va applied as multiply + lane reduction) ---
    ta = jnp.tanh(jnp.dot(x_bf, wa_ref[...], preferred_element_type=jnp.float32)
                  + ba_ref[...])                                            # (TB*S, A) f32
    u = jnp.sum(ta.reshape(TB, S, A) * va_ref[...], axis=-1) + bva_ref[...]  # (TB, S)

    # ---- a_t = softmax over positions; c_t = sum_s a_t * x_t ------------------
    u_max = jnp.max(u, axis=-1, keepdims=True)
    e = jnp.exp(u - u_max)
    a_t = e * pl.reciprocal(jnp.sum(e, axis=-1, keepdims=True), approx=True)  # (TB, S)
    c_t = jnp.sum(a_t.reshape(TB, S, 1) * x_t, axis=1)                        # (TB, H)

    # ---- w_c = W_wt(x_t) + W_ct(c_t) + (b_wt + b_ct) --------------------------
    wc = (jnp.dot(x_bf, wwt_ref[...],
                  preferred_element_type=jnp.float32).reshape(TB, S, H)
          + jnp.dot(c_t.astype(jnp.bfloat16), wct_ref[...],
                    preferred_element_type=jnp.float32).reshape(TB, 1, H)
          + bwc_ref[...])                                                     # (TB, S, H)

    # ---- logits = Vc(tanh(w_c))  (Vc applied as multiply + lane reduction) ----
    logits = jnp.sum(jnp.tanh(wc) * vc_ref[...], axis=-1) + bvc_ref[...]      # (TB, S)

    # ---- log_softmax over positions -------------------------------------------
    l_max = jnp.max(logits, axis=-1, keepdims=True)
    z = logits - l_max
    log_probs = z - jnp.log(jnp.sum(jnp.exp(z), axis=-1, keepdims=True))

    # ---- masking: positions 1..S-1 where demand == 0 OR truck load == 0 -------
    # (the reference applies remaining_load_mask twice; demand_exceeds mask is unused)
    dem = dem_ref[...]            # (TB, S)
    load = load_ref[...]          # (TB, 1)
    idx = lax.broadcasted_iota(jnp.int32, (TB, S), 1)
    mask = (idx >= 1) & ((dem == 0.0) | (load == 0.0))
    out_ref[...] = jnp.where(mask, jnp.float32(-jnp.inf), log_probs)


def attention_forward(params, decoder_output, encoder_outputs,
                      remaining_truck_load, remaining_customer_demand,
                      vehicle_capacity):
    bf = jnp.bfloat16

    # --- glue: concat encoder outputs on channels, permute to channels-last, bf16 ---
    enc = jnp.transpose(jnp.concatenate(encoder_outputs, axis=1),
                        (0, 2, 1)).astype(bf)                        # (B, S, E)
    B, S, E = enc.shape
    D = decoder_output.shape[-1]
    H = params["W1"].shape[1]
    A = params["Wa"].shape[1]

    dec = decoder_output.reshape(B, D).astype(bf)
    dem = remaining_customer_demand.reshape(B, S).astype(jnp.float32)
    load = remaining_truck_load.reshape(B, 1).astype(jnp.float32)

    # --- batch tiling: TB rows per grid step ---
    TB = B if B <= 32 else 32
    B_pad = -(-B // TB) * TB
    if B_pad != B:
        pad = B_pad - B
        enc = jnp.pad(enc, ((0, pad), (0, 0), (0, 0)))
        dec = jnp.pad(dec, ((0, pad), (0, 0)))
        dem = jnp.pad(dem, ((0, pad), (0, 0)))
        load = jnp.pad(load, ((0, pad), (0, 0)))

    # --- bf16 weights for MXU matmuls; biases / Va / Vc rows stay f32 ---
    w1 = params["W1"].astype(bf)
    w2 = params["W2"].astype(bf)
    wa = params["Wa"].astype(bf)
    wwt = params["W_wt"].astype(bf)
    wct = params["W_ct"].astype(bf)
    b12 = (params["b1"] + params["b2"]).astype(jnp.float32)          # (1, H)
    bwc = (params["b_wt"] + params["b_ct"]).astype(jnp.float32)      # (1, H)
    ba = params["ba"].astype(jnp.float32)                            # (1, A)
    va = params["Va"].reshape(1, A).astype(jnp.float32)
    bva = params["bVa"].reshape(1, 1).astype(jnp.float32)
    vc = params["Vc"].reshape(1, H).astype(jnp.float32)
    bvc = params["bVc"].reshape(1, 1).astype(jnp.float32)

    in_specs = [
        pl.BlockSpec((TB, S, E), lambda b: (b, 0, 0)),   # encoder (bf16)
        pl.BlockSpec((TB, D), lambda b: (b, 0)),         # decoder (bf16)
        pl.BlockSpec((TB, S), lambda b: (b, 0)),         # demand (lane layout)
        pl.BlockSpec((TB, 1), lambda b: (b, 0)),         # truck load
        pl.BlockSpec((E, H), lambda b: (0, 0)),          # W1
        pl.BlockSpec((D, H), lambda b: (0, 0)),          # W2
        pl.BlockSpec((1, H), lambda b: (0, 0)),          # b1 + b2
        pl.BlockSpec((H, A), lambda b: (0, 0)),          # Wa
        pl.BlockSpec((1, A), lambda b: (0, 0)),          # ba
        pl.BlockSpec((1, A), lambda b: (0, 0)),          # Va (row vector)
        pl.BlockSpec((1, 1), lambda b: (0, 0)),          # bVa
        pl.BlockSpec((H, H), lambda b: (0, 0)),          # W_wt
        pl.BlockSpec((H, H), lambda b: (0, 0)),          # W_ct
        pl.BlockSpec((1, H), lambda b: (0, 0)),          # b_wt + b_ct
        pl.BlockSpec((1, H), lambda b: (0, 0)),          # Vc (row vector)
        pl.BlockSpec((1, 1), lambda b: (0, 0)),          # bVc
    ]
    out_spec = pl.BlockSpec((TB, S), lambda b: (b, 0))

    log_probs = pl.pallas_call(
        attention_kernel,
        out_shape=jax.ShapeDtypeStruct((B_pad, S), jnp.float32),
        grid_spec=pltpu.PrefetchScalarGridSpec(
            num_scalar_prefetch=0,
            grid=(B_pad // TB,),
            in_specs=in_specs,
            out_specs=out_spec,
        ),
        compiler_params=pltpu.CompilerParams(
            dimension_semantics=("parallel",)),
    )(enc, dec, dem, load,
      w1, w2, b12, wa, ba, va, bva, wwt, wct, bwc, vc, bvc)

    log_probs = log_probs[:B]

    # --- glue: greedy pointer selection + truck-load / demand update ---
    pointer = jnp.argmax(log_probs, axis=1)                          # (B,)
    load_f = remaining_truck_load.astype(jnp.float32).reshape(B)
    demand = remaining_customer_demand.astype(jnp.float32).reshape(B, S)
    sel_demand = jnp.take_along_axis(demand, pointer[:, None], axis=1)[:, 0]
    is_depot = pointer == 0
    cap = jnp.asarray(vehicle_capacity, dtype=jnp.float32)
    new_load = jnp.where(is_depot, cap, load_f - sel_demand)
    # (reference updates demand[i, p] AFTER the load update, using the new load)
    new_sel_demand = sel_demand - new_load
    upd_mask = ((jnp.arange(S)[None, :] == pointer[:, None]) & (~is_depot)[:, None])
    new_demand = jnp.where(upd_mask, new_sel_demand[:, None], demand)

    return log_probs, pointer, new_load, new_demand


def init_params(key, enc_hidden=256, dec_hidden=128):
    ks = jax.random.split(key, 16)
    s = 0.1
    p = {
        "W1":  s * jax.random.normal(ks[0], (enc_hidden, 128), jnp.float32),
        "b1":  s * jax.random.normal(ks[1], (1, 128), jnp.float32),
        "W2":  s * jax.random.normal(ks[2], (dec_hidden, 128), jnp.float32),
        "b2":  s * jax.random.normal(ks[3], (1, 128), jnp.float32),
        "W_wt": s * jax.random.normal(ks[4], (dec_hidden, 128), jnp.float32),
        "b_wt": s * jax.random.normal(ks[5], (1, 128), jnp.float32),
        "W_ct": s * jax.random.normal(ks[6], (dec_hidden, 128), jnp.float32),
        "b_ct": s * jax.random.normal(ks[7], (1, 128), jnp.float32),
        "Wa":  s * jax.random.normal(ks[8], (dec_hidden, 32), jnp.float32),
        "ba":  s * jax.random.normal(ks[9], (1, 32), jnp.float32),
        "Va":  s * jax.random.normal(ks[10], (32, 1), jnp.float32),
        "bVa": s * jax.random.normal(ks[11], (1, 1), jnp.float32),
        "Vc":  s * jax.random.normal(ks[12], (dec_hidden, 1), jnp.float32),
        "bVc": s * jax.random.normal(ks[13], (1, 1), jnp.float32),
        # Wc (Linear(128, 32)) is declared in __init__ but never used in forward().
    }
    return p


if __name__ == "__main__":
    key = jax.random.PRNGKey(0)
    B, S, D = 2, 8, 128          # batch, #positions (depot + customers), decoder hidden
    k0, k1, k2, k3, k4, k5 = jax.random.split(key, 6)

    params = init_params(k0)

    # two encoder outputs of shape (B, 128, S)  -> cat on channels gives (B, 256, S)
    enc_a = jax.random.normal(k1, (B, 128, S), jnp.float32)
    enc_b = jax.random.normal(k2, (B, 128, S), jnp.float32)
    decoder_output = jax.random.normal(k3, (B, 1, D), jnp.float32)

    remaining_customer_demand = jax.random.uniform(
        k4, (B, S), jnp.float32, minval=1.0, maxval=5.0)
    remaining_customer_demand = remaining_customer_demand.at[:, 3].set(0.0)  # exercise mask
    remaining_truck_load = jax.random.uniform(
        k5, (B,), jnp.float32, minval=5.0, maxval=10.0)
    vehicle_capacity = 10.0

    fwd = jax.jit(attention_forward)
    outs = fwd(params, decoder_output, [enc_a, enc_b],
               remaining_truck_load, remaining_customer_demand,
               vehicle_capacity)
    log_probs, pointer, new_load, new_demand = jax.block_until_ready(outs)
    print("KERNEL_OK")
</pallas_src>

<mosaic_0001>
module attributes {stable_mosaic.version = 11 : i64} {
  func.func @attention_kernel(%arg0: i32, %arg1: memref<2x8x256xbf16, #tpu.memory_space<vmem>>, %arg2: memref<2x128xbf16, #tpu.memory_space<vmem>>, %arg3: memref<2x8xf32, #tpu.memory_space<vmem>>, %arg4: memref<2x1xf32, #tpu.memory_space<vmem>>, %arg5: memref<256x128xbf16, #tpu.memory_space<vmem>>, %arg6: memref<128x128xbf16, #tpu.memory_space<vmem>>, %arg7: memref<1x128xf32, #tpu.memory_space<vmem>>, %arg8: memref<128x32xbf16, #tpu.memory_space<vmem>>, %arg9: memref<1x32xf32, #tpu.memory_space<vmem>>, %arg10: memref<1x32xf32, #tpu.memory_space<vmem>>, %arg11: memref<1x1xf32, #tpu.memory_space<vmem>>, %arg12: memref<128x128xbf16, #tpu.memory_space<vmem>>, %arg13: memref<128x128xbf16, #tpu.memory_space<vmem>>, %arg14: memref<1x128xf32, #tpu.memory_space<vmem>>, %arg15: memref<1x128xf32, #tpu.memory_space<vmem>>, %arg16: memref<1x1xf32, #tpu.memory_space<vmem>>, %arg17: memref<2x8xf32, #tpu.memory_space<vmem>>) attributes {dimension_semantics = [#tpu.dimension_semantics<parallel>], iteration_bounds = array<i64: 1>, scalar_prefetch = 0 : i64, scratch_operands = 0 : i64, tpu.core_type = #tpu.core_type<tc>, window_params = [{transform_indices = @transform_0, window_bounds = array<i64: 2, 8, 256>}, {transform_indices = @transform_1, window_bounds = array<i64: 2, 128>}, {transform_indices = @transform_2, window_bounds = array<i64: 2, 8>}, {transform_indices = @transform_3, window_bounds = array<i64: 2, 1>}, {pipeline_mode = #tpu.pipeline_mode<synchronous>, transform_indices = @transform_4, window_bounds = array<i64: 256, 128>}, {pipeline_mode = #tpu.pipeline_mode<synchronous>, transform_indices = @transform_5, window_bounds = array<i64: 128, 128>}, {pipeline_mode = #tpu.pipeline_mode<synchronous>, transform_indices = @transform_6, window_bounds = array<i64: 1, 128>}, {pipeline_mode = #tpu.pipeline_mode<synchronous>, transform_indices = @transform_7, window_bounds = array<i64: 128, 32>}, {pipeline_mode = #tpu.pipeline_mode<synchronous>, transform_indices = @transform_8, window_bounds = array<i64: 1, 32>}, {pipeline_mode = #tpu.pipeline_mode<synchronous>, transform_indices = @transform_9, window_bounds = array<i64: 1, 32>}, {pipeline_mode = #tpu.pipeline_mode<synchronous>, transform_indices = @transform_10, window_bounds = array<i64: 1, 1>}, {pipeline_mode = #tpu.pipeline_mode<synchronous>, transform_indices = @transform_11, window_bounds = array<i64: 128, 128>}, {pipeline_mode = #tpu.pipeline_mode<synchronous>, transform_indices = @transform_12, window_bounds = array<i64: 128, 128>}, {pipeline_mode = #tpu.pipeline_mode<synchronous>, transform_indices = @transform_13, window_bounds = array<i64: 1, 128>}, {pipeline_mode = #tpu.pipeline_mode<synchronous>, transform_indices = @transform_14, window_bounds = array<i64: 1, 128>}, {pipeline_mode = #tpu.pipeline_mode<synchronous>, transform_indices = @transform_15, window_bounds = array<i64: 1, 1>}, {transform_indices = @transform_16, window_bounds = array<i64: 2, 8>}]} {
    %c0 = arith.constant 0 : index
    %c0_0 = arith.constant 0 : index
    %c0_1 = arith.constant 0 : index
    %0 = vector.load %arg1[%c0, %c0_0, %c0_1] : memref<2x8x256xbf16, #tpu.memory_space<vmem>>, vector<2x8x256xbf16>
    %1 = vector.shape_cast %0 : vector<2x8x256xbf16> to vector<16x256xbf16>
    %c0_2 = arith.constant 0 : index
    %c0_3 = arith.constant 0 : index
    %2 = vector.load %arg2[%c0_2, %c0_3] : memref<2x128xbf16, #tpu.memory_space<vmem>>, vector<2x128xbf16>
    %c0_4 = arith.constant 0 : index
    %c0_5 = arith.constant 0 : index
    %3 = vector.load %arg5[%c0_4, %c0_5] : memref<256x128xbf16, #tpu.memory_space<vmem>>, vector<256x128xbf16>
    %cst = arith.constant dense<0.000000e+00> : vector<16x128xf32>
    %4 = tpu.matmul %1, %3, %cst {dimension_numbers = #tpu.dot_dimension_numbers<[1], [0], [0], [1], [0, 0, 1, 1], [], []>} : vector<16x256xbf16>, vector<256x128xbf16>, vector<16x128xf32> -> vector<16x128xf32>
    %c0_6 = arith.constant 0 : index
    %c0_7 = arith.constant 0 : index
    %5 = vector.load %arg6[%c0_6, %c0_7] : memref<128x128xbf16, #tpu.memory_space<vmem>>, vector<128x128xbf16>
    %cst_8 = arith.constant dense<0.000000e+00> : vector<2x128xf32>
    %6 = tpu.matmul %2, %5, %cst_8 {dimension_numbers = #tpu.dot_dimension_numbers<[1], [0], [0], [1], [0, 0, 1, 1], [], []>} : vector<2x128xbf16>, vector<128x128xbf16>, vector<2x128xf32> -> vector<2x128xf32>
    %7 = vector.shape_cast %4 : vector<16x128xf32> to vector<2x8x128xf32>
    %8 = vector.shape_cast %6 : vector<2x128xf32> to vector<2x1x128xf32>
    %9 = vector.broadcast %8 : vector<2x1x128xf32> to vector<2x8x128xf32>
    %10 = arith.addf %7, %9 : vector<2x8x128xf32>
    %c0_9 = arith.constant 0 : index
    %c0_10 = arith.constant 0 : index
    %11 = vector.load %arg7[%c0_9, %c0_10] : memref<1x128xf32, #tpu.memory_space<vmem>>, vector<1x128xf32>
    %12 = vector.shape_cast %11 : vector<1x128xf32> to vector<1x1x128xf32>
    %13 = vector.broadcast %12 : vector<1x1x128xf32> to vector<2x8x128xf32>
    %14 = arith.addf %10, %13 : vector<2x8x128xf32>
    %15 = vector.shape_cast %14 : vector<2x8x128xf32> to vector<16x128xf32>
    %16 = arith.truncf %15 : vector<16x128xf32> to vector<16x128xbf16>
    %c0_11 = arith.constant 0 : index
    %c0_12 = arith.constant 0 : index
    %17 = vector.load %arg8[%c0_11, %c0_12] : memref<128x32xbf16, #tpu.memory_space<vmem>>, vector<128x32xbf16>
    %cst_13 = arith.constant dense<0.000000e+00> : vector<16x32xf32>
    %18 = tpu.matmul %16, %17, %cst_13 {dimension_numbers = #tpu.dot_dimension_numbers<[1], [0], [0], [1], [0, 0, 1, 1], [], []>} : vector<16x128xbf16>, vector<128x32xbf16>, vector<16x32xf32> -> vector<16x32xf32>
    %c0_14 = arith.constant 0 : index
    %c0_15 = arith.constant 0 : index
    %19 = vector.load %arg9[%c0_14, %c0_15] : memref<1x32xf32, #tpu.memory_space<vmem>>, vector<1x32xf32>
    %20 = vector.broadcast %19 : vector<1x32xf32> to vector<16x32xf32>
    %21 = arith.addf %18, %20 : vector<16x32xf32>
    %22 = math.tanh %21 : vector<16x32xf32>
    %23 = vector.shape_cast %22 : vector<16x32xf32> to vector<2x8x32xf32>
    %c0_16 = arith.constant 0 : index
    %c0_17 = arith.constant 0 : index
    %24 = vector.load %arg10[%c0_16, %c0_17] : memref<1x32xf32, #tpu.memory_space<vmem>>, vector<1x32xf32>
    %25 = vector.shape_cast %24 : vector<1x32xf32> to vector<1x1x32xf32>
    %26 = vector.broadcast %25 : vector<1x1x32xf32> to vector<2x8x32xf32>
    %27 = arith.mulf %23, %26 : vector<2x8x32xf32>
    %cst_18 = arith.constant dense<0.000000e+00> : vector<2x8xf32>
    %28 = vector.multi_reduction <add>, %27, %cst_18 [2] : vector<2x8x32xf32> to vector<2x8xf32>
    %c0_19 = arith.constant 0 : index
    %c0_20 = arith.constant 0 : index
    %29 = vector.load %arg11[%c0_19, %c0_20] : memref<1x1xf32, #tpu.memory_space<vmem>>, vector<1x1xf32>
    %30 = vector.broadcast %29 : vector<1x1xf32> to vector<2x8xf32>
    %31 = arith.addf %28, %30 : vector<2x8xf32>
    %cst_21 = arith.constant dense<0xFF800000> : vector<2xf32>
    %32 = vector.multi_reduction <maximumf>, %31, %cst_21 [1] : vector<2x8xf32> to vector<2xf32>
    %33 = vector.shape_cast %32 : vector<2xf32> to vector<2x1xf32>
    %34 = vector.broadcast %33 : vector<2x1xf32> to vector<2x8xf32>
    %35 = arith.subf %31, %34 : vector<2x8xf32>
    %36 = math.exp %35 : vector<2x8xf32>
    %cst_22 = arith.constant dense<0.000000e+00> : vector<2xf32>
    %37 = vector.multi_reduction <add>, %36, %cst_22 [1] : vector<2x8xf32> to vector<2xf32>
    %38 = vector.shape_cast %37 : vector<2xf32> to vector<2x1xf32>
    %39 = tpu.reciprocal %38 {approx = true} : vector<2x1xf32> -> vector<2x1xf32>
    %40 = vector.broadcast %39 : vector<2x1xf32> to vector<2x8xf32>
    %41 = arith.mulf %36, %40 : vector<2x8xf32>
    %42 = vector.shape_cast %41 : vector<2x8xf32> to vector<2x8x1xf32>
    %43 = vector.broadcast %42 : vector<2x8x1xf32> to vector<2x8x128xf32>
    %44 = arith.mulf %43, %14 : vector<2x8x128xf32>
    %cst_23 = arith.constant dense<0.000000e+00> : vector<2x128xf32>
    %45 = vector.multi_reduction <add>, %44, %cst_23 [1] : vector<2x8x128xf32> to vector<2x128xf32>
    %c0_24 = arith.constant 0 : index
    %c0_25 = arith.constant 0 : index
    %46 = vector.load %arg12[%c0_24, %c0_25] : memref<128x128xbf16, #tpu.memory_space<vmem>>, vector<128x128xbf16>
    %cst_26 = arith.constant dense<0.000000e+00> : vector<16x128xf32>
    %47 = tpu.matmul %16, %46, %cst_26 {dimension_numbers = #tpu.dot_dimension_numbers<[1], [0], [0], [1], [0, 0, 1, 1], [], []>} : vector<16x128xbf16>, vector<128x128xbf16>, vector<16x128xf32> -> vector<16x128xf32>
    %48 = vector.shape_cast %47 : vector<16x128xf32> to vector<2x8x128xf32>
    %49 = arith.truncf %45 : vector<2x128xf32> to vector<2x128xbf16>
    %c0_27 = arith.constant 0 : index
    %c0_28 = arith.constant 0 : index
    %50 = vector.load %arg13[%c0_27, %c0_28] : memref<128x128xbf16, #tpu.memory_space<vmem>>, vector<128x128xbf16>
    %cst_29 = arith.constant dense<0.000000e+00> : vector<2x128xf32>
    %51 = tpu.matmul %49, %50, %cst_29 {dimension_numbers = #tpu.dot_dimension_numbers<[1], [0], [0], [1], [0, 0, 1, 1], [], []>} : vector<2x128xbf16>, vector<128x128xbf16>, vector<2x128xf32> -> vector<2x128xf32>
    %52 = vector.shape_cast %51 : vector<2x128xf32> to vector<2x1x128xf32>
    %53 = vector.broadcast %52 : vector<2x1x128xf32> to vector<2x8x128xf32>
    %54 = arith.addf %48, %53 : vector<2x8x128xf32>
    %c0_30 = arith.constant 0 : index
    %c0_31 = arith.constant 0 : index
    %55 = vector.load %arg14[%c0_30, %c0_31] : memref<1x128xf32, #tpu.memory_space<vmem>>, vector<1x128xf32>
    %56 = vector.shape_cast %55 : vector<1x128xf32> to vector<1x1x128xf32>
    %57 = vector.broadcast %56 : vector<1x1x128xf32> to vector<2x8x128xf32>
    %58 = arith.addf %54, %57 : vector<2x8x128xf32>
    %59 = math.tanh %58 : vector<2x8x128xf32>
    %c0_32 = arith.constant 0 : index
    %c0_33 = arith.constant 0 : index
    %60 = vector.load %arg15[%c0_32, %c0_33] : memref<1x128xf32, #tpu.memory_space<vmem>>, vector<1x128xf32>
    %61 = vector.shape_cast %60 : vector<1x128xf32> to vector<1x1x128xf32>
    %62 = vector.broadcast %61 : vector<1x1x128xf32> to vector<2x8x128xf32>
    %63 = arith.mulf %59, %62 : vector<2x8x128xf32>
    %cst_34 = arith.constant dense<0.000000e+00> : vector<2x8xf32>
    %64 = vector.multi_reduction <add>, %63, %cst_34 [2] : vector<2x8x128xf32> to vector<2x8xf32>
    %c0_35 = arith.constant 0 : index
    %c0_36 = arith.constant 0 : index
    %65 = vector.load %arg16[%c0_35, %c0_36] : memref<1x1xf32, #tpu.memory_space<vmem>>, vector<1x1xf32>
    %66 = vector.broadcast %65 : vector<1x1xf32> to vector<2x8xf32>
    %67 = arith.addf %64, %66 : vector<2x8xf32>
    %cst_37 = arith.constant dense<0xFF800000> : vector<2xf32>
    %68 = vector.multi_reduction <maximumf>, %67, %cst_37 [1] : vector<2x8xf32> to vector<2xf32>
    %69 = vector.shape_cast %68 : vector<2xf32> to vector<2x1xf32>
    %70 = vector.broadcast %69 : vector<2x1xf32> to vector<2x8xf32>
    %71 = arith.subf %67, %70 : vector<2x8xf32>
    %72 = math.exp %71 : vector<2x8xf32>
    %cst_38 = arith.constant dense<0.000000e+00> : vector<2xf32>
    %73 = vector.multi_reduction <add>, %72, %cst_38 [1] : vector<2x8xf32> to vector<2xf32>
    %74 = vector.shape_cast %73 : vector<2xf32> to vector<2x1xf32>
    %75 = math.log %74 : vector<2x1xf32>
    %76 = vector.broadcast %75 : vector<2x1xf32> to vector<2x8xf32>
    %77 = arith.subf %71, %76 : vector<2x8xf32>
    %c0_39 = arith.constant 0 : index
    %c0_40 = arith.constant 0 : index
    %78 = vector.load %arg3[%c0_39, %c0_40] : memref<2x8xf32, #tpu.memory_space<vmem>>, vector<2x8xf32>
    %c0_41 = arith.constant 0 : index
    %c0_42 = arith.constant 0 : index
    %79 = vector.load %arg4[%c0_41, %c0_42] : memref<2x1xf32, #tpu.memory_space<vmem>>, vector<2x1xf32>
    %80 = tpu.iota {dimensions = array<i32: 1>} : vector<2x8xi32>
    %c1_i32 = arith.constant 1 : i32
    %81 = vector.broadcast %c1_i32 : i32 to vector<2x8xi32>
    %82 = arith.cmpi sge, %80, %81 : vector<2x8xi32>
    %cst_43 = arith.constant 0.000000e+00 : f32
    %83 = vector.broadcast %cst_43 : f32 to vector<2x8xf32>
    %84 = arith.cmpf oeq, %78, %83 : vector<2x8xf32>
    %cst_44 = arith.constant 0.000000e+00 : f32
    %85 = vector.broadcast %cst_44 : f32 to vector<2x1xf32>
    %86 = arith.cmpf oeq, %79, %85 : vector<2x1xf32>
    %87 = vector.broadcast %86 : vector<2x1xi1> to vector<2x8xi1>
    %88 = arith.ori %84, %87 : vector<2x8xi1>
    %89 = arith.andi %82, %88 : vector<2x8xi1>
    %cst_45 = arith.constant 0xFF800000 : f32
    %90 = vector.broadcast %cst_45 : f32 to vector<2x8xf32>
    %91 = arith.select %89, %90, %77 : vector<2x8xi1>, vector<2x8xf32>
    %c0_46 = arith.constant 0 : index
    %c0_47 = arith.constant 0 : index
    %92 = vector.load %arg17[%c0_46, %c0_47] : memref<2x8xf32, #tpu.memory_space<vmem>>, vector<2x8xf32>
    tpu.vector_store %arg17[%c0_46, %c0_47], %91 {strides = array<i32>} : memref<2x8xf32, #tpu.memory_space<vmem>>, vector<2x8xf32>,
    return
  }
  func.func @transform_0(%arg0: i32) -> (i32, i32, i32) {
    %c0_i32 = arith.constant 0 : i32
    %c0_i32_0 = arith.constant 0 : i32
    %c0_i32_1 = arith.constant 0 : i32
    return %arg0, %c0_i32, %c0_i32_0 : i32, i32, i32
  }
  func.func @transform_1(%arg0: i32) -> (i32, i32) {
    %c0_i32 = arith.constant 0 : i32
    %c0_i32_0 = arith.constant 0 : i32
    return %arg0, %c0_i32 : i32, i32
  }
  func.func @transform_2(%arg0: i32) -> (i32, i32) {
    %c0_i32 = arith.constant 0 : i32
    %c0_i32_0 = arith.constant 0 : i32
    return %arg0, %c0_i32 : i32, i32
  }
  func.func @transform_3(%arg0: i32) -> (i32, i32) {
    %c0_i32 = arith.constant 0 : i32
    %c0_i32_0 = arith.constant 0 : i32
    return %arg0, %c0_i32 : i32, i32
  }
  func.func @transform_4(%arg0: i32) -> (i32, i32) {
    %c0_i32 = arith.constant 0 : i32
    %c0_i32_0 = arith.constant 0 : i32
    %c0_i32_1 = arith.constant 0 : i32
    return %c0_i32, %c0_i32_0 : i32, i32
  }
  func.func @transform_5(%arg0: i32) -> (i32, i32) {
    %c0_i32 = arith.constant 0 : i32
    %c0_i32_0 = arith.constant 0 : i32
    %c0_i32_1 = arith.constant 0 : i32
    return %c0_i32, %c0_i32_0 : i32, i32
  }
  func.func @transform_6(%arg0: i32) -> (i32, i32) {
    %c0_i32 = arith.constant 0 : i32
    %c0_i32_0 = arith.constant 0 : i32
    %c0_i32_1 = arith.constant 0 : i32
    return %c0_i32, %c0_i32_0 : i32, i32
  }
  func.func @transform_7(%arg0: i32) -> (i32, i32) {
    %c0_i32 = arith.constant 0 : i32
    %c0_i32_0 = arith.constant 0 : i32
    %c0_i32_1 = arith.constant 0 : i32
    return %c0_i32, %c0_i32_0 : i32, i32
  }
  func.func @transform_8(%arg0: i32) -> (i32, i32) {
    %c0_i32 = arith.constant 0 : i32
    %c0_i32_0 = arith.constant 0 : i32
    %c0_i32_1 = arith.constant 0 : i32
    return %c0_i32, %c0_i32_0 : i32, i32
  }
  func.func @transform_9(%arg0: i32) -> (i32, i32) {
    %c0_i32 = arith.constant 0 : i32
    %c0_i32_0 = arith.constant 0 : i32
    %c0_i32_1 = arith.constant 0 : i32
    return %c0_i32, %c0_i32_0 : i32, i32
  }
  func.func @transform_10(%arg0: i32) -> (i32, i32) {
    %c0_i32 = arith.constant 0 : i32
    %c0_i32_0 = arith.constant 0 : i32
    %c0_i32_1 = arith.constant 0 : i32
    return %c0_i32, %c0_i32_0 : i32, i32
  }
  func.func @transform_11(%arg0: i32) -> (i32, i32) {
    %c0_i32 = arith.constant 0 : i32
    %c0_i32_0 = arith.constant 0 : i32
    %c0_i32_1 = arith.constant 0 : i32
    return %c0_i32, %c0_i32_0 : i32, i32
  }
  func.func @transform_12(%arg0: i32) -> (i32, i32) {
    %c0_i32 = arith.constant 0 : i32
    %c0_i32_0 = arith.constant 0 : i32
    %c0_i32_1 = arith.constant 0 : i32
    return %c0_i32, %c0_i32_0 : i32, i32
  }
  func.func @transform_13(%arg0: i32) -> (i32, i32) {
    %c0_i32 = arith.constant 0 : i32
    %c0_i32_0 = arith.constant 0 : i32
    %c0_i32_1 = arith.constant 0 : i32
    return %c0_i32, %c0_i32_0 : i32, i32
  }
  func.func @transform_14(%arg0: i32) -> (i32, i32) {
    %c0_i32 = arith.constant 0 : i32
    %c0_i32_0 = arith.constant 0 : i32
    %c0_i32_1 = arith.constant 0 : i32
    return %c0_i32, %c0_i32_0 : i32, i32
  }
  func.func @transform_15(%arg0: i32) -> (i32, i32) {
    %c0_i32 = arith.constant 0 : i32
    %c0_i32_0 = arith.constant 0 : i32
    %c0_i32_1 = arith.constant 0 : i32
    return %c0_i32, %c0_i32_0 : i32, i32
  }
  func.func @transform_16(%arg0: i32) -> (i32, i32) {
    %c0_i32 = arith.constant 0 : i32
    %c0_i32_0 = arith.constant 0 : i32
    return %arg0, %c0_i32 : i32, i32
  }
}

</mosaic_0001>

<llo_original>
// kernel: attention_forward.1
$region0: #{attention_forward.1}
  #allocation0 [shape = 'u32[]', space=smem, size = 0x4, offset = 0x4, fixed_abs, tag = 'smem constant byte address 0x4 - core index']
  #allocation1 [shape = 'u32[144,128]{1,0:T(1,128)}', space=vmem, size = 0x12000, scoped, tag = 'internal scratch']
  #allocation2 [shape = 'f32[1,1]{1,0:T(1,128)S(1)}', space=vmem, size = 0x200, scoped, tag = 'scoped memory for attention_forward.1']
  #allocation3 [shape = 'f32[1,1]{1,0:T(1,128)S(1)}', space=vmem, size = 0x200, scoped, tag = 'scoped memory for attention_forward.1']
  %s0 = inlined_call_operand.vmem [shape: bf16[2,8,256], index: 0, kind: input, shape index: {}]
  %s1 = inlined_call_operand.vmem [shape: bf16[2,128], index: 1, kind: input, shape index: {}]
  %s2 = inlined_call_operand.vmem [shape: f32[2,8], index: 2, kind: input, shape index: {}]
  %s3 = inlined_call_operand.vmem [shape: f32[2,1], index: 3, kind: input, shape index: {}]
  %s4 = inlined_call_operand.vmem [shape: bf16[256,128], index: 4, kind: input, shape index: {}]
  %s5 = inlined_call_operand.vmem [shape: bf16[128,128], index: 5, kind: input, shape index: {}]
  %s6 = inlined_call_operand.vmem [shape: f32[1,128], index: 6, kind: input, shape index: {}]
  %s7 = inlined_call_operand.vmem [shape: bf16[128,32], index: 7, kind: input, shape index: {}]
  %s8 = inlined_call_operand.vmem [shape: f32[1,32], index: 8, kind: input, shape index: {}]
  %s9 = inlined_call_operand.vmem [shape: f32[1,32], index: 9, kind: input, shape index: {}]
  %s10 = inlined_call_operand.<no memory space> [shape: f32[1,1], index: 10, kind: input, shape index: {}]
  %s11 = inlined_call_operand.vmem [shape: bf16[128,128], index: 11, kind: input, shape index: {}]
  %s12 = inlined_call_operand.vmem [shape: bf16[128,128], index: 12, kind: input, shape index: {}]
  %s13 = inlined_call_operand.vmem [shape: f32[1,128], index: 13, kind: input, shape index: {}]
  %s14 = inlined_call_operand.vmem [shape: f32[1,128], index: 14, kind: input, shape index: {}]
  %s15 = inlined_call_operand.<no memory space> [shape: f32[1,1], index: 15, kind: input, shape index: {}]
  %s16 = inlined_call_operand.vmem [shape: f32[2,8], index: 16, kind: output, shape index: {}]
  %s17 = sld [smem:[#allocation0]]
  $region74: #{attention_forward.1} parent=0
    _
  %s19 = ssub.s32 1, %s17
  %s20 = scalar_select 0, %s19, %s17
  %v21 = vstv %s10
  %22 = vst [vmem:[#allocation2] sm:$0x1] %v21
  %v23 = vstv %s15
  %24 = vst [vmem:[#allocation3] sm:$0x1] %v23
  // Predicated region
  $region2: #{attention_forward.1} parent=0 // pred_check
    _
  $region3: #{attention_forward.1} parent=0 // pred_check_branch
    %26 = sbr.rel (0) target = $region5
  $region4: #{attention_forward.1} parent=0 // pred_region
    _
  $region5: #{attention_forward.1} parent=0 // pred_fallthru
    _
  // Predicated region
  $region6: #{attention_forward.1} parent=0 // pred_check
    _
  $region7: #{attention_forward.1} parent=0 // pred_check_branch
    %28 = sbr.rel (0) target = $region9
  $region8: #{attention_forward.1} parent=0 // pred_region
    _
  $region9: #{attention_forward.1} parent=0 // pred_fallthru
    _
  // Predicated region
  $region10: #{attention_forward.1} parent=0 // pred_check
    _
  $region11: #{attention_forward.1} parent=0 // pred_check_branch
    %30 = sbr.rel (0) target = $region13
  $region12: #{attention_forward.1} parent=0 // pred_region
    _
  $region13: #{attention_forward.1} parent=0 // pred_fallthru
    _
  // Predicated region
  $region14: #{attention_forward.1} parent=0 // pred_check
    _
  $region15: #{attention_forward.1} parent=0 // pred_check_branch
    %32 = sbr.rel (0) target = $region17
  $region16: #{attention_forward.1} parent=0 // pred_region
    _
  $region17: #{attention_forward.1} parent=0 // pred_fallthru
    _
  // Predicated region
  $region18: #{attention_forward.1} parent=0 // pred_check
    _
  $region19: #{attention_forward.1} parent=0 // pred_check_branch
    %34 = sbr.rel (0) target = $region21
  $region20: #{attention_forward.1} parent=0 // pred_region
    _
  $region21: #{attention_forward.1} parent=0 // pred_fallthru
    _
  // Predicated region
  $region22: #{attention_forward.1} parent=0 // pred_check
    _
  $region23: #{attention_forward.1} parent=0 // pred_check_branch
    %36 = sbr.rel (0) target = $region25
  $region24: #{attention_forward.1} parent=0 // pred_region
    _
  $region25: #{attention_forward.1} parent=0 // pred_fallthru
    _
  // Predicated region
  $region26: #{attention_forward.1} parent=0 // pred_check
    _
  $region27: #{attention_forward.1} parent=0 // pred_check_branch
    %38 = sbr.rel (0) target = $region29
  $region28: #{attention_forward.1} parent=0 // pred_region
    _
  $region29: #{attention_forward.1} parent=0 // pred_fallthru
    _
  // Predicated region
  $region30: #{attention_forward.1} parent=0 // pred_check
    _
  $region31: #{attention_forward.1} parent=0 // pred_check_branch
    %40 = sbr.rel (0) target = $region33
  $region32: #{attention_forward.1} parent=0 // pred_region
    _
  $region33: #{attention_forward.1} parent=0 // pred_fallthru
    _
  // Predicated region
  $region34: #{attention_forward.1} parent=0 // pred_check
    _
  $region35: #{attention_forward.1} parent=0 // pred_check_branch
    %42 = sbr.rel (0) target = $region37
  $region36: #{attention_forward.1} parent=0 // pred_region
    _
  $region37: #{attention_forward.1} parent=0 // pred_fallthru
    _
  // Predicated region
  $region38: #{attention_forward.1} parent=0 // pred_check
    _
  $region39: #{attention_forward.1} parent=0 // pred_check_branch
    %44 = sbr.rel (0) target = $region41
  $region40: #{attention_forward.1} parent=0 // pred_region
    _
  $region41: #{attention_forward.1} parent=0 // pred_fallthru
    _
  // Predicated region
  $region42: #{attention_forward.1} parent=0 // pred_check
    _
  $region43: #{attention_forward.1} parent=0 // pred_check_branch
    %46 = sbr.rel (0) target = $region45
  $region44: #{attention_forward.1} parent=0 // pred_region
    _
  $region45: #{attention_forward.1} parent=0 // pred_fallthru
    _
  // Predicated region
  $region46: #{attention_forward.1} parent=0 // pred_check
    _
  $region47: #{attention_forward.1} parent=0 // pred_check_branch
    %48 = sbr.rel (0) target = $region49
  $region48: #{attention_forward.1} parent=0 // pred_region
    _
  $region49: #{attention_forward.1} parent=0 // pred_fallthru
    _
  // Predicated region
  $region50: #{attention_forward.1} parent=0 // pred_check
    _
  $region51: #{attention_forward.1} parent=0 // pred_check_branch
    %50 = sbr.rel (0) target = $region53
  $region52: #{attention_forward.1} parent=0 // pred_region
    _
  $region53: #{attention_forward.1} parent=0 // pred_fallthru
    _
  // Predicated region
  $region54: #{attention_forward.1} parent=0 // pred_check
    _
  $region55: #{attention_forward.1} parent=0 // pred_check_branch
    %52 = sbr.rel (0) target = $region57
  $region56: #{attention_forward.1} parent=0 // pred_region
    _
  $region57: #{attention_forward.1} parent=0 // pred_fallthru
    _
  // Predicated region
  $region58: #{attention_forward.1} parent=0 // pred_check
    _
  $region59: #{attention_forward.1} parent=0 // pred_check_branch
    %54 = sbr.rel (0) target = $region61
  $region60: #{attention_forward.1} parent=0 // pred_region
    _
  $region61: #{attention_forward.1} parent=0 // pred_fallthru
    _
  // Predicated region
  $region62: #{attention_forward.1} parent=0 // pred_check
    _
  $region63: #{attention_forward.1} parent=0 // pred_check_branch
    %56 = sbr.rel (0) target = $region65
  $region64: #{attention_forward.1} parent=0 // pred_region
    _
  $region65: #{attention_forward.1} parent=0 // pred_fallthru
    _
  %v58 = vld [vmem:[%s0] sm:$0xff]
  %v59 = vld [vmem:[%s0 + $0x8] sm:$0xff]
  %v60 = vld [vmem:[%s1] sm:$0x1]
  %v61 = vld [vmem:[%s4] sm:$0xf]
  %v62 = vld [vmem:[%s4 + $0x4] sm:$0xf]
  %v63 = vld [vmem:[%s4 + $0x8] sm:$0xf]
  %v64 = vld [vmem:[%s4 + $0xc] sm:$0xf]
  %v65 = vld [vmem:[%s4 + $0x10] sm:$0xf]
  %v66 = vld [vmem:[%s4 + $0x14] sm:$0xf]
  %v67 = vld [vmem:[%s4 + $0x18] sm:$0xf]
  %v68 = vld [vmem:[%s4 + $0x1c] sm:$0xf]
  %v69 = vld [vmem:[%s4 + $0x20] sm:$0xf]
  %v70 = vld [vmem:[%s4 + $0x24] sm:$0xf]
  %v71 = vld [vmem:[%s4 + $0x28] sm:$0xf]
  %v72 = vld [vmem:[%s4 + $0x2c] sm:$0xf]
  %v73 = vld [vmem:[%s4 + $0x30] sm:$0xf]
  %v74 = vld [vmem:[%s4 + $0x34] sm:$0xf]
  %v75 = vld [vmem:[%s4 + $0x38] sm:$0xf]
  %v76 = vld [vmem:[%s4 + $0x3c] sm:$0xf]
  %v77 = vld [vmem:[%s4 + $0x40] sm:$0xf]
  %v78 = vld [vmem:[%s4 + $0x44] sm:$0xf]
  %v79 = vld [vmem:[%s4 + $0x48] sm:$0xf]
  %v80 = vld [vmem:[%s4 + $0x4c] sm:$0xf]
  %v81 = vld [vmem:[%s4 + $0x50] sm:$0xf]
  %v82 = vld [vmem:[%s4 + $0x54] sm:$0xf]
  %v83 = vld [vmem:[%s4 + $0x58] sm:$0xf]
  %v84 = vld [vmem:[%s4 + $0x5c] sm:$0xf]
  %v85 = vld [vmem:[%s4 + $0x60] sm:$0xf]
  %v86 = vld [vmem:[%s4 + $0x64] sm:$0xf]
  %v87 = vld [vmem:[%s4 + $0x68] sm:$0xf]
  %v88 = vld [vmem:[%s4 + $0x6c] sm:$0xf]
  %v89 = vld [vmem:[%s4 + $0x70] sm:$0xf]
  %v90 = vld [vmem:[%s4 + $0x74] sm:$0xf]
  %v91 = vld [vmem:[%s4 + $0x78] sm:$0xf]
  %v92 = vld [vmem:[%s4 + $0x7c] sm:$0xf]
  %v95 = vunpack.c.l.b16 %v58
  %v96 = vunpack.c.h.b16 %v58
  %v97 = vunpack.c.l.b16 %v59
  %v98 = vunpack.c.h.b16 %v59
  %v99 = vpack.c.b16 %v97, %v95
  %v100 = vpack.c.b16 %v98, %v96
  %v135 = vunpack.c.l.b16 %v61
  %v136 = vunpack.c.l.b16 %v62
  %v137 = vunpack.c.l.b16 %v63
  %v138 = vunpack.c.l.b16 %v64
  %v139 = vunpack.c.l.b16 %v65
  %v140 = vunpack.c.l.b16 %v66
  %v141 = vunpack.c.l.b16 %v67
  %v142 = vunpack.c.l.b16 %v68
  %v143 = vunpack.c.l.b16 %v69
  %v144 = vunpack.c.l.b16 %v70
  %v145 = vunpack.c.l.b16 %v71
  %v146 = vunpack.c.l.b16 %v72
  %v147 = vunpack.c.l.b16 %v73
  %v148 = vunpack.c.l.b16 %v74
  %v149 = vunpack.c.l.b16 %v75
  %v150 = vunpack.c.l.b16 %v76
  %v151 = vunpack.c.l.b16 %v77
  %v152 = vunpack.c.l.b16 %v78
  %v153 = vunpack.c.l.b16 %v79
  %v154 = vunpack.c.l.b16 %v80
  %v155 = vunpack.c.l.b16 %v81
  %v156 = vunpack.c.l.b16 %v82
  %v157 = vunpack.c.l.b16 %v83
  %v158 = vunpack.c.l.b16 %v84
  %v159 = vunpack.c.l.b16 %v85
  %v160 = vunpack.c.l.b16 %v86
  %v161 = vunpack.c.l.b16 %v87
  %v162 = vunpack.c.l.b16 %v88
  %v163 = vunpack.c.l.b16 %v89
  %v164 = vunpack.c.l.b16 %v90
  %v165 = vunpack.c.l.b16 %v91
  %v166 = vunpack.c.l.b16 %v92
  %v167 = vpack.c.b16 %v136, %v135
  %v168 = vpack.c.b16 %v138, %v137
  %v169 = vpack.c.b16 %v140, %v139
  %v170 = vpack.c.b16 %v142, %v141
  %v171 = vpack.c.b16 %v144, %v143
  %v172 = vpack.c.b16 %v146, %v145
  %v173 = vpack.c.b16 %v148, %v147
  %v174 = vpack.c.b16 %v150, %v149
  %v175 = vpack.c.b16 %v152, %v151
  %v176 = vpack.c.b16 %v154, %v153
  %v177 = vpack.c.b16 %v156, %v155
  %v178 = vpack.c.b16 %v158, %v157
  %v179 = vpack.c.b16 %v160, %v159
  %v180 = vpack.c.b16 %v162, %v161
  %v181 = vpack.c.b16 %v164, %v163
  %v182 = vpack.c.b16 %v166, %v165
  %199 = vmatprep.subr.bf16.mxu0 0
  %200 = vmatpush1.bf16.msra.mxu0 %v167
  %201 = vmatprep.subr.bf16.mxu0 0
  %202 = vmatpush1.bf16.msra.mxu0 %v168
  %203 = vmatprep.subr.bf16.mxu0 0
  %204 = vmatpush1.bf16.msra.mxu0 %v169
  %205 = vmatprep.subr.bf16.mxu0 0
  %206 = vmatpush1.bf16.msra.mxu0 %v170
  %207 = vmatprep.subr.bf16.mxu0 0
  %208 = vmatpush1.bf16.msra.mxu0 %v171
  %209 = vmatprep.subr.bf16.mxu0 0
  %210 = vmatpush1.bf16.msra.mxu0 %v172
  %211 = vmatprep.subr.bf16.mxu0 0
  %212 = vmatpush1.bf16.msra.mxu0 %v173
  %213 = vmatprep.subr.bf16.mxu0 0
  %214 = vmatpush1.bf16.msra.mxu0 %v174
  %215 = vmatprep.subr.bf16.mxu0 0
  %216 = vmatpush1.bf16.msra.mxu0 %v175
  %217 = vmatprep.subr.bf16.mxu0 0
  %218 = vmatpush1.bf16.msra.mxu0 %v176
  %219 = vmatprep.subr.bf16.mxu0 0
  %220 = vmatpush1.bf16.msra.mxu0 %v177
  %221 = vmatprep.subr.bf16.mxu0 0
  %222 = vmatpush1.bf16.msra.mxu0 %v178
  %223 = vmatprep.subr.bf16.mxu0 0
  %224 = vmatpush1.bf16.msra.mxu0 %v179
  %225 = vmatprep.subr.bf16.mxu0 0
  %226 = vmatpush1.bf16.msra.mxu0 %v180
  %227 = vmatprep.subr.bf16.mxu0 0
  %228 = vmatpush1.bf16.msra.mxu0 %v181
  %229 = vmatprep.subr.bf16.mxu0 0
  %230 = vmatpush1.bf16.msra.mxu0 %v182
  %231 = vmatprep.mubr.bf16.mxu0 %v100
  %232 = vmatmul.mubr.bf16.gmra.mrb[0].mxu0 %v99
  %v233 = vpop.f32.mrb[0].mxu0
  %v234 = vadd.f32 0.0, %v233
  %v235 = vpop.f32.mrb[0].mxu0
  %v236 = vpop.f32.mrb[0].mxu0
  %v237 = vadd.f32 0.0, %v236
  %v238 = vpop.f32.mrb[0].mxu0
  %239 = vdwg.mxu0
  %v240 = vld [vmem:[%s5] sm:$0xf]
  %v241 = vld [vmem:[%s5 + $0x4] sm:$0xf]
  %v242 = vld [vmem:[%s5 + $0x8] sm:$0xf]
  %v243 = vld [vmem:[%s5 + $0xc] sm:$0xf]
  %v244 = vld [vmem:[%s5 + $0x10] sm:$0xf]
  %v245 = vld [vmem:[%s5 + $0x14] sm:$0xf]
  %v246 = vld [vmem:[%s5 + $0x18] sm:$0xf]
  %v247 = vld [vmem:[%s5 + $0x1c] sm:$0xf]
  %v248 = vld [vmem:[%s5 + $0x20] sm:$0xf]
  %v249 = vld [vmem:[%s5 + $0x24] sm:$0xf]
  %v250 = vld [vmem:[%s5 + $0x28] sm:$0xf]
  %v251 = vld [vmem:[%s5 + $0x2c] sm:$0xf]
  %v252 = vld [vmem:[%s5 + $0x30] sm:$0xf]
  %v253 = vld [vmem:[%s5 + $0x34] sm:$0xf]
  %v254 = vld [vmem:[%s5 + $0x38] sm:$0xf]
  %v255 = vld [vmem:[%s5 + $0x3c] sm:$0xf]
  %v272 = vunpack.c.l.b16 %v240
  %v273 = vunpack.c.l.b16 %v241
  %v274 = vunpack.c.l.b16 %v242
  %v275 = vunpack.c.l.b16 %v243
  %v276 = vunpack.c.l.b16 %v244
  %v277 = vunpack.c.l.b16 %v245
  %v278 = vunpack.c.l.b16 %v246
  %v279 = vunpack.c.l.b16 %v247
  %v280 = vunpack.c.l.b16 %v248
  %v281 = vunpack.c.l.b16 %v249
  %v282 = vunpack.c.l.b16 %v250
  %v283 = vunpack.c.l.b16 %v251
  %v284 = vunpack.c.l.b16 %v252
  %v285 = vunpack.c.l.b16 %v253
  %v286 = vunpack.c.l.b16 %v254
  %v287 = vunpack.c.l.b16 %v255
  %v288 = vpack.c.b16 %v273, %v272
  %v289 = vpack.c.b16 %v275, %v274
  %v290 = vpack.c.b16 %v277, %v276
  %v291 = vpack.c.b16 %v279, %v278
  %v292 = vpack.c.b16 %v281, %v280
  %v293 = vpack.c.b16 %v283, %v282
  %v294 = vpack.c.b16 %v285, %v284
  %v295 = vpack.c.b16 %v287, %v286
  %304 = vmatprep.subr.bf16.mxu0 0
  %305 = vmatpush1.bf16.msra.mxu0 %v288
  %306 = vmatprep.subr.bf16.mxu0 0
  %307 = vmatpush1.bf16.msra.mxu0 %v289
  %308 = vmatprep.subr.bf16.mxu0 0
  %309 = vmatpush1.bf16.msra.mxu0 %v290
  %310 = vmatprep.subr.bf16.mxu0 0
  %311 = vmatpush1.bf16.msra.mxu0 %v291
  %312 = vmatprep.subr.bf16.mxu0 0
  %313 = vmatpush1.bf16.msra.mxu0 %v292
  %314 = vmatprep.subr.bf16.mxu0 0
  %315 = vmatpush1.bf16.msra.mxu0 %v293
  %316 = vmatprep.subr.bf16.mxu0 0
  %317 = vmatpush1.bf16.msra.mxu0 %v294
  %318 = vmatprep.subr.bf16.mxu0 0
  %319 = vmatpush1.bf16.msra.mxu0 %v295
  %320 = vmatprep.subr.bf16.mxu0 0
  %321 = vmatpush1.bf16.msra.mxu0 0
  %322 = vmatprep.subr.bf16.mxu0 0
  %323 = vmatpush1.bf16.msra.mxu0 0
  %324 = vmatprep.subr.bf16.mxu0 0
  %325 = vmatpush1.bf16.msra.mxu0 0
  %326 = vmatprep.subr.bf16.mxu0 0
  %327 = vmatpush1.bf16.msra.mxu0 0
  %328 = vmatprep.subr.bf16.mxu0 0
  %329 = vmatpush1.bf16.msra.mxu0 0
  %330 = vmatprep.subr.bf16.mxu0 0
  %331 = vmatpush1.bf16.msra.mxu0 0
  %332 = vmatprep.subr.bf16.mxu0 0
  %333 = vmatpush1.bf16.msra.mxu0 0
  %334 = vmatprep.subr.bf16.mxu0 0
  %335 = vmatpush1.bf16.msra.mxu0 0
  %336 = vmatprep.mubr.bf16.mxu0 0
  %337 = vmatmul.mubr.bf16.gmra.mrb[0].mxu0 %v60
  %v338 = vpop.f32.mrb[0].mxu0
  %v339 = vadd.f32 0.0, %v338
  %v340 = vpop.f32.mrb[0].mxu0
  %v341 = vpop.f32.mrb[0].mxu0
  %v342 = vpop.f32.mrb[0].mxu0
  %343 = vdwg.mxu0
  %v346 = vunpack.c.l.s4 1966171168
  %v347 = vunpack.c.0.s8 %v346
  %v348 = vlaneseq
  %v349 = vshrl.u32 %v348, 7
  %v350 = vsub.s32 %v347, %v349
  %v351 = vrot.slane %v339, %v350
  %v352 = vcombine.high %v351, %v351
  %v354 = vunpack.c.l.s4 1966171168
  %v355 = vunpack.c.0.s8 %v354
  %v356 = vlaneseq
  %v357 = vshrl.u32 %v356, 7
  %v358 = vsub.s32 %v355, %v357
  %v359 = vrot.slane %v351, %v358
  %v361 = vunpack.c.l.s4 1966171168
  %v362 = vunpack.c.0.s8 %v361
  %v363 = vlaneseq
  %v364 = vshrl.u32 %v363, 7
  %v365 = vsub.s32 %v362, %v364
  %v366 = vrot.slane %v352, %v365
  %v367 = vlaneseq
  %v368 = vshrl.u32 %v367, 7
  %v369 = vsub.s32 0, %v368
  %v370 = vrot.slane %v359, %v369
  %v371 = vlaneseq
  %v372 = vshrl.u32 %v371, 7
  %v373 = vsub.s32 0, %v372
  %v374 = vrot.slane %v366, %v373
  %v377 = vadd.f32 %v234, %v370
  %v378 = vadd.f32 %v237, %v374
  %v379 = vld [vmem:[%s6] sm:$0x1]
  %v381 = vlaneseq
  %v382 = vshrl.u32 %v381, 7
  %v383 = vsub.s32 0, %v382
  %v384 = vrot.slane %v379, %v383
  %v386 = vadd.f32 %v377, %v384
  %v387 = vadd.f32 %v378, %v384
  %v388 = vpack.c.bf16 %v387, %v386
  %v389 = vld [vmem:[%s7] sm:$0xf]
  %v390 = vld [vmem:[%s7 + $0x4] sm:$0xf]
  %v391 = vld [vmem:[%s7 + $0x8] sm:$0xf]
  %v392 = vld [vmem:[%s7 + $0xc] sm:$0xf]
  %v393 = vld [vmem:[%s7 + $0x10] sm:$0xf]
  %v394 = vld [vmem:[%s7 + $0x14] sm:$0xf]
  %v395 = vld [vmem:[%s7 + $0x18] sm:$0xf]
  %v396 = vld [vmem:[%s7 + $0x1c] sm:$0xf]
  %v397 = vld [vmem:[%s7 + $0x20] sm:$0xf]
  %v398 = vld [vmem:[%s7 + $0x24] sm:$0xf]
  %v399 = vld [vmem:[%s7 + $0x28] sm:$0xf]
  %v400 = vld [vmem:[%s7 + $0x2c] sm:$0xf]
  %v401 = vld [vmem:[%s7 + $0x30] sm:$0xf]
  %v402 = vld [vmem:[%s7 + $0x34] sm:$0xf]
  %v403 = vld [vmem:[%s7 + $0x38] sm:$0xf]
  %v404 = vld [vmem:[%s7 + $0x3c] sm:$0xf]
  %v405 = vld [vmem:[%s8] sm:$0x1]
  %v407 = vlaneseq
  %v408 = vshrl.u32 %v407, 7
  %v409 = vsub.s32 0, %v408
  %v410 = vrot.slane %v405, %v409
  %v428 = vunpack.c.l.b16 %v389
  %v429 = vunpack.c.l.b16 %v390
  %v430 = vunpack.c.l.b16 %v391
  %v431 = vunpack.c.l.b16 %v392
  %v432 = vunpack.c.l.b16 %v393
  %v433 = vunpack.c.l.b16 %v394
  %v434 = vunpack.c.l.b16 %v395
  %v435 = vunpack.c.l.b16 %v396
  %v436 = vunpack.c.l.b16 %v397
  %v437 = vunpack.c.l.b16 %v398
  %v438 = vunpack.c.l.b16 %v399
  %v439 = vunpack.c.l.b16 %v400
  %v440 = vunpack.c.l.b16 %v401
  %v441 = vunpack.c.l.b16 %v402
  %v442 = vunpack.c.l.b16 %v403
  %v443 = vunpack.c.l.b16 %v404
  %v444 = vpack.c.b16 %v429, %v428
  %v445 = vpack.c.b16 %v431, %v430
  %v446 = vpack.c.b16 %v433, %v432
  %v447 = vpack.c.b16 %v435, %v434
  %v448 = vpack.c.b16 %v437, %v436
  %v449 = vpack.c.b16 %v439, %v438
  %v450 = vpack.c.b16 %v441, %v440
  %v451 = vpack.c.b16 %v443, %v442
  %460 = vmatprep.subr.bf16.mxu0 0
  %461 = vmatpush1.bf16.msra.mxu0 %v444
  %462 = vmatprep.subr.bf16.mxu0 0
  %463 = vmatpush1.bf16.msra.mxu0 %v445
  %464 = vmatprep.subr.bf16.mxu0 0
  %465 = vmatpush1.bf16.msra.mxu0 %v446
  %466 = vmatprep.subr.bf16.mxu0 0
  %467 = vmatpush1.bf16.msra.mxu0 %v447
  %468 = vmatprep.subr.bf16.mxu0 0
  %469 = vmatpush1.bf16.msra.mxu0 %v448
  %470 = vmatprep.subr.bf16.mxu0 0
  %471 = vmatpush1.bf16.msra.mxu0 %v449
  %472 = vmatprep.subr.bf16.mxu0 0
  %473 = vmatpush1.bf16.msra.mxu0 %v450
  %474 = vmatprep.subr.bf16.mxu0 0
  %475 = vmatpush1.bf16.msra.mxu0 %v451
  %476 = vmatprep.subr.bf16.mxu0 0
  %477 = vmatpush1.bf16.msra.mxu0 0
  %478 = vmatprep.subr.bf16.mxu0 0
  %479 = vmatpush1.bf16.msra.mxu0 0
  %480 = vmatprep.subr.bf16.mxu0 0
  %481 = vmatpush1.bf16.msra.mxu0 0
  %482 = vmatprep.subr.bf16.mxu0 0
  %483 = vmatpush1.bf16.msra.mxu0 0
  %484 = vmatprep.subr.bf16.mxu0 0
  %485 = vmatpush1.bf16.msra.mxu0 0
  %486 = vmatprep.subr.bf16.mxu0 0
  %487 = vmatpush1.bf16.msra.mxu0 0
  %488 = vmatprep.subr.bf16.mxu0 0
  %489 = vmatpush1.bf16.msra.mxu0 0
  %490 = vmatprep.subr.bf16.mxu0 0
  %491 = vmatpush1.bf16.msra.mxu0 0
  %492 = vmatprep.mubr.bf16.mxu0 0
  %493 = vmatmul.mubr.bf16.gmra.mrb[0].mxu0 %v388
  %v494 = vpop.f32.mrb[0].mxu0
  %v495 = vadd.f32 %v410, %v494
  %v496 = vpop.f32.mrb[0].mxu0
  %v497 = vpop.f32.mrb[0].mxu0
  %v498 = vadd.f32 %v410, %v497
  %v499 = vpop.f32.mrb[0].mxu0
  %500 = vdwg.mxu0
  %v501 = vtanh.pop %v495
  %v502 = vtanh.pop %v498
  %v503 = vld [vmem:[%s9] sm:$0x1]
  %v505 = vlaneseq
  %v506 = vshrl.u32 %v505, 7
  %v507 = vsub.s32 0, %v506
  %v508 = vrot.slane %v503, %v507
  %v510 = vmul.f32 %v501, %v508
  %v511 = vmul.f32 %v502, %v508
  %vm512 = vcmask 261120
  %v513 = vsel %vm512, %v510, 0.0
  %514 = vadd.xlane.f32.xlu0 %v513
  %v515 = vpop.xlane.xlu0 %514
  %v516 = vsel %vm512, %v511, 0.0
  %517 = vadd.xlane.f32.xlu0 %v516
  %v518 = vpop.xlane.xlu0 %517
  %v519 = vld [vmem:[#allocation2] sm:$0x1]
  %v521 = vlaneseq
  %v522 = vshrl.u32 %v521, 7
  %v523 = vsub.s32 0, %v522
  %v524 = vrot.slane %v519, %v523
  %525 = vset.pattern.permute.xlu0 0
  %526 = vperm.xlu0 %525, %v524
  %v527 = vpop.permute.xlu0 %526
  %v529 = vadd.f32 %v515, %v527
  %v530 = vadd.f32 %v518, %v527
  %v533 = vlaneseq
  %v534 = vand.u32 %v533, 127
  %v535 = vlaneseq
  %v536 = vshrl.u32 %v535, 7
  %v537 = vsub.s32 %v534, %v536
  %v538 = vrot.slane %v529, %v537
  %v539 = vlaneseq
  %v540 = vshrl.u32 %v539, 7
  %v541 = vsub.s32 %v534, %v540
  %v542 = vrot.slane %v530, %v541
  %vm543 = vcmask 1041409
  %v544 = vsel %vm543, %v542, %v538
  %vm546 = vcmask 58368
  %v547 = vsel %vm546, %v544, -inf
  %548 = vmax.xlane.f32.xlu0 %v547
  %v549 = vpop.xlane.xlu0 %548
  %v551 = vlaneseq
  %v552 = vshrl.u32 %v551, 7
  %v553 = vsub.s32 0, %v552
  %v554 = vrot.slane %v549, %v553
  %v555 = vlaneseq
  %v556 = vshrl.u32 %v555, 7
  %v557 = vsub.s32 1, %v556
  %v558 = vrot.slane %v549, %v557
  %v561 = vsub.f32 %v529, %v554
  %v562 = vsub.f32 %v530, %v558
  %v563 = vmul.f32 %v561, 1.442695
  %v564 = vpow.pop %v563
  %v565 = vmul.f32 %v562, 1.442695
  %v566 = vpow.pop %v565
  %569 = vset.pattern.permute.xlu0 0
  %570 = vperm.xlu0 %569, %v564
  %v571 = vpop.permute.xlu0 %570
  %572 = vset.pattern.permute.xlu0 0
  %573 = vperm.xlu0 %572, %v566
  %v574 = vpop.permute.xlu0 %573
  %v575 = vlaneseq
  %v576 = vshrl.u32 %v575, 7
  %v577 = vsub.s32 %v534, %v576
  %v578 = vrot.slane %v571, %v577
  %v579 = vlaneseq
  %v580 = vshrl.u32 %v579, 7
  %v581 = vsub.s32 %v534, %v580
  %v582 = vrot.slane %v574, %v581
  %v583 = vsel %vm543, %v582, %v578
  %v585 = vsel %vm546, %v583, 0.0
  %586 = vadd.xlane.f32.xlu0 %v585
  %v587 = vpop.xlane.xlu0 %586
  %v588 = vrcp.pop %v587
  %v590 = vlaneseq
  %v591 = vshrl.u32 %v590, 7
  %v592 = vsub.s32 0, %v591
  %v593 = vrot.slane %v588, %v592
  %v594 = vlaneseq
  %v595 = vshrl.u32 %v594, 7
  %v596 = vsub.s32 1, %v595
  %v597 = vrot.slane %v588, %v596
  %v600 = vmul.f32 %v564, %v593
  %v601 = vmul.f32 %v566, %v597
  %603 = vset.pattern.permute.xlu0 0
  %604 = vperm.xlu0 %603, %v600
  %v605 = vpop.permute.xlu0 %604
  %608 = vset.pattern.permute.xlu0 0
  %609 = vperm.xlu0 %608, %v601
  %v610 = vpop.permute.xlu0 %609
  %v612 = vmul.f32 %v605, %v386
  %v613 = vmul.f32 %v610, %v387
  %v614 = vrot.slane %v612, 4
  %v615 = vadd.f32 %v612, %v614
  %v616 = vrot.slane %v615, 2
  %v617 = vadd.f32 %v615, %v616
  %v618 = vrot.slane %v617, 1
  %v619 = vadd.f32 %v617, %v618
  %v620 = vrot.slane %v613, 4
  %v621 = vadd.f32 %v613, %v620
  %v622 = vrot.slane %v621, 2
  %v623 = vadd.f32 %v621, %v622
  %v624 = vrot.slane %v623, 1
  %v625 = vadd.f32 %v623, %v624
  %v626 = vld [vmem:[%s11] sm:$0xf]
  %v627 = vld [vmem:[%s11 + $0x4] sm:$0xf]
  %v628 = vld [vmem:[%s11 + $0x8] sm:$0xf]
  %v629 = vld [vmem:[%s11 + $0xc] sm:$0xf]
  %v630 = vld [vmem:[%s11 + $0x10] sm:$0xf]
  %v631 = vld [vmem:[%s11 + $0x14] sm:$0xf]
  %v632 = vld [vmem:[%s11 + $0x18] sm:$0xf]
  %v633 = vld [vmem:[%s11 + $0x1c] sm:$0xf]
  %v634 = vld [vmem:[%s11 + $0x20] sm:$0xf]
  %v635 = vld [vmem:[%s11 + $0x24] sm:$0xf]
  %v636 = vld [vmem:[%s11 + $0x28] sm:$0xf]
  %v637 = vld [vmem:[%s11 + $0x2c] sm:$0xf]
  %v638 = vld [vmem:[%s11 + $0x30] sm:$0xf]
  %v639 = vld [vmem:[%s11 + $0x34] sm:$0xf]
  %v640 = vld [vmem:[%s11 + $0x38] sm:$0xf]
  %v641 = vld [vmem:[%s11 + $0x3c] sm:$0xf]
  %v658 = vunpack.c.l.b16 %v626
  %v659 = vunpack.c.l.b16 %v627
  %v660 = vunpack.c.l.b16 %v628
  %v661 = vunpack.c.l.b16 %v629
  %v662 = vunpack.c.l.b16 %v630
  %v663 = vunpack.c.l.b16 %v631
  %v664 = vunpack.c.l.b16 %v632
  %v665 = vunpack.c.l.b16 %v633
  %v666 = vunpack.c.l.b16 %v634
  %v667 = vunpack.c.l.b16 %v635
  %v668 = vunpack.c.l.b16 %v636
  %v669 = vunpack.c.l.b16 %v637
  %v670 = vunpack.c.l.b16 %v638
  %v671 = vunpack.c.l.b16 %v639
  %v672 = vunpack.c.l.b16 %v640
  %v673 = vunpack.c.l.b16 %v641
  %v674 = vpack.c.b16 %v659, %v658
  %v675 = vpack.c.b16 %v661, %v660
  %v676 = vpack.c.b16 %v663, %v662
  %v677 = vpack.c.b16 %v665, %v664
  %v678 = vpack.c.b16 %v667, %v666
  %v679 = vpack.c.b16 %v669, %v668
  %v680 = vpack.c.b16 %v671, %v670
  %v681 = vpack.c.b16 %v673, %v672
  %690 = vmatprep.subr.bf16.mxu0 0
  %691 = vmatpush1.bf16.msra.mxu0 %v674
  %692 = vmatprep.subr.bf16.mxu0 0
  %693 = vmatpush1.bf16.msra.mxu0 %v675
  %694 = vmatprep.subr.bf16.mxu0 0
  %695 = vmatpush1.bf16.msra.mxu0 %v676
  %696 = vmatprep.subr.bf16.mxu0 0
  %697 = vmatpush1.bf16.msra.mxu0 %v677
  %698 = vmatprep.subr.bf16.mxu0 0
  %699 = vmatpush1.bf16.msra.mxu0 %v678
  %700 = vmatprep.subr.bf16.mxu0 0
  %701 = vmatpush1.bf16.msra.mxu0 %v679
  %702 = vmatprep.subr.bf16.mxu0 0
  %703 = vmatpush1.bf16.msra.mxu0 %v680
  %704 = vmatprep.subr.bf16.mxu0 0
  %705 = vmatpush1.bf16.msra.mxu0 %v681
  %706 = vmatprep.subr.bf16.mxu0 0
  %707 = vmatpush1.bf16.msra.mxu0 0
  %708 = vmatprep.subr.bf16.mxu0 0
  %709 = vmatpush1.bf16.msra.mxu0 0
  %710 = vmatprep.subr.bf16.mxu0 0
  %711 = vmatpush1.bf16.msra.mxu0 0
  %712 = vmatprep.subr.bf16.mxu0 0
  %713 = vmatpush1.bf16.msra.mxu0 0
  %714 = vmatprep.subr.bf16.mxu0 0
  %715 = vmatpush1.bf16.msra.mxu0 0
  %716 = vmatprep.subr.bf16.mxu0 0
  %717 = vmatpush1.bf16.msra.mxu0 0
  %718 = vmatprep.subr.bf16.mxu0 0
  %719 = vmatpush1.bf16.msra.mxu0 0
  %720 = vmatprep.subr.bf16.mxu0 0
  %721 = vmatpush1.bf16.msra.mxu0 0
  %722 = vmatprep.mubr.bf16.mxu0 0
  %723 = vmatmul.mubr.bf16.gmra.mrb[0].mxu0 %v388
  %v724 = vpop.f32.mrb[0].mxu0
  %v725 = vadd.f32 0.0, %v724
  %v726 = vpop.f32.mrb[0].mxu0
  %v727 = vpop.f32.mrb[0].mxu0
  %v728 = vadd.f32 0.0, %v727
  %v729 = vpop.f32.mrb[0].mxu0
  %730 = vdwg.mxu0
  %v731 = vpack.c.bf16 %v619, %v619
  %v732 = vpack.c.bf16 %v625, %v625
  %v733 = vld [vmem:[%s12] sm:$0xf]
  %v734 = vld [vmem:[%s12 + $0x4] sm:$0xf]
  %v735 = vld [vmem:[%s12 + $0x8] sm:$0xf]
  %v736 = vld [vmem:[%s12 + $0xc] sm:$0xf]
  %v737 = vld [vmem:[%s12 + $0x10] sm:$0xf]
  %v738 = vld [vmem:[%s12 + $0x14] sm:$0xf]
  %v739 = vld [vmem:[%s12 + $0x18] sm:$0xf]
  %v740 = vld [vmem:[%s12 + $0x1c] sm:$0xf]
  %v741 = vld [vmem:[%s12 + $0x20] sm:$0xf]
  %v742 = vld [vmem:[%s12 + $0x24] sm:$0xf]
  %v743 = vld [vmem:[%s12 + $0x28] sm:$0xf]
  %v744 = vld [vmem:[%s12 + $0x2c] sm:$0xf]
  %v745 = vld [vmem:[%s12 + $0x30] sm:$0xf]
  %v746 = vld [vmem:[%s12 + $0x34] sm:$0xf]
  %v747 = vld [vmem:[%s12 + $0x38] sm:$0xf]
  %v748 = vld [vmem:[%s12 + $0x3c] sm:$0xf]
  %v751 = vunpack.c.l.b16 %v731
  %v752 = vunpack.c.l.b16 %v732
  %v753 = vsel %vm543, %v752, %v751
  %v754 = vpack.c.b16 %v753, %v753
  %v772 = vunpack.c.l.b16 %v733
  %v773 = vunpack.c.l.b16 %v734
  %v774 = vunpack.c.l.b16 %v735
  %v775 = vunpack.c.l.b16 %v736
  %v776 = vunpack.c.l.b16 %v737
  %v777 = vunpack.c.l.b16 %v738
  %v778 = vunpack.c.l.b16 %v739
  %v779 = vunpack.c.l.b16 %v740
  %v780 = vunpack.c.l.b16 %v741
  %v781 = vunpack.c.l.b16 %v742
  %v782 = vunpack.c.l.b16 %v743
  %v783 = vunpack.c.l.b16 %v744
  %v784 = vunpack.c.l.b16 %v745
  %v785 = vunpack.c.l.b16 %v746
  %v786 = vunpack.c.l.b16 %v747
  %v787 = vunpack.c.l.b16 %v748
  %v788 = vpack.c.b16 %v773, %v772
  %v789 = vpack.c.b16 %v775, %v774
  %v790 = vpack.c.b16 %v777, %v776
  %v791 = vpack.c.b16 %v779, %v778
  %v792 = vpack.c.b16 %v781, %v780
  %v793 = vpack.c.b16 %v783, %v782
  %v794 = vpack.c.b16 %v785, %v784
  %v795 = vpack.c.b16 %v787, %v786
  %804 = vmatprep.subr.bf16.mxu0 0
  %805 = vmatpush1.bf16.msra.mxu0 %v788
  %806 = vmatprep.subr.bf16.mxu0 0
  %807 = vmatpush1.bf16.msra.mxu0 %v789
  %808 = vmatprep.subr.bf16.mxu0 0
  %809 = vmatpush1.bf16.msra.mxu0 %v790
  %810 = vmatprep.subr.bf16.mxu0 0
  %811 = vmatpush1.bf16.msra.mxu0 %v791
  %812 = vmatprep.subr.bf16.mxu0 0
  %813 = vmatpush1.bf16.msra.mxu0 %v792
  %814 = vmatprep.subr.bf16.mxu0 0
  %815 = vmatpush1.bf16.msra.mxu0 %v793
  %816 = vmatprep.subr.bf16.mxu0 0
  %817 = vmatpush1.bf16.msra.mxu0 %v794
  %818 = vmatprep.subr.bf16.mxu0 0
  %819 = vmatpush1.bf16.msra.mxu0 %v795
  %820 = vmatprep.subr.bf16.mxu0 0
  %821 = vmatpush1.bf16.msra.mxu0 0
  %822 = vmatprep.subr.bf16.mxu0 0
  %823 = vmatpush1.bf16.msra.mxu0 0
  %824 = vmatprep.subr.bf16.mxu0 0
  %825 = vmatpush1.bf16.msra.mxu0 0
  %826 = vmatprep.subr.bf16.mxu0 0
  %827 = vmatpush1.bf16.msra.mxu0 0
  %828 = vmatprep.subr.bf16.mxu0 0
  %829 = vmatpush1.bf16.msra.mxu0 0
  %830 = vmatprep.subr.bf16.mxu0 0
  %831 = vmatpush1.bf16.msra.mxu0 0
  %832 = vmatprep.subr.bf16.mxu0 0
  %833 = vmatpush1.bf16.msra.mxu0 0
  %834 = vmatprep.subr.bf16.mxu0 0
  %835 = vmatpush1.bf16.msra.mxu0 0
  %836 = vmatprep.mubr.bf16.mxu0 0
  %837 = vmatmul.mubr.bf16.gmra.mrb[0].mxu0 %v754
  %v838 = vpop.f32.mrb[0].mxu0
  %v839 = vadd.f32 0.0, %v838
  %v840 = vpop.f32.mrb[0].mxu0
  %v841 = vpop.f32.mrb[0].mxu0
  %v842 = vpop.f32.mrb[0].mxu0
  %843 = vdwg.mxu0
  %v846 = vunpack.c.l.s4 1966171168
  %v847 = vunpack.c.0.s8 %v846
  %v848 = vlaneseq
  %v849 = vshrl.u32 %v848, 7
  %v850 = vsub.s32 %v847, %v849
  %v851 = vrot.slane %v839, %v850
  %v852 = vcombine.high %v851, %v851
  %v854 = vunpack.c.l.s4 1966171168
  %v855 = vunpack.c.0.s8 %v854
  %v856 = vlaneseq
  %v857 = vshrl.u32 %v856, 7
  %v858 = vsub.s32 %v855, %v857
  %v859 = vrot.slane %v851, %v858
  %v861 = vunpack.c.l.s4 1966171168
  %v862 = vunpack.c.0.s8 %v861
  %v863 = vlaneseq
  %v864 = vshrl.u32 %v863, 7
  %v865 = vsub.s32 %v862, %v864
  %v866 = vrot.slane %v852, %v865
  %v867 = vlaneseq
  %v868 = vshrl.u32 %v867, 7
  %v869 = vsub.s32 0, %v868
  %v870 = vrot.slane %v859, %v869
  %v871 = vlaneseq
  %v872 = vshrl.u32 %v871, 7
  %v873 = vsub.s32 0, %v872
  %v874 = vrot.slane %v866, %v873
  %v877 = vadd.f32 %v725, %v870
  %v878 = vadd.f32 %v728, %v874
  %v879 = vld [vmem:[%s13] sm:$0x1]
  %v881 = vlaneseq
  %v882 = vshrl.u32 %v881, 7
  %v883 = vsub.s32 0, %v882
  %v884 = vrot.slane %v879, %v883
  %v886 = vadd.f32 %v877, %v884
  %v887 = vadd.f32 %v878, %v884
  %v888 = vtanh.pop %v886
  %v889 = vtanh.pop %v887
  %v890 = vld [vmem:[%s14] sm:$0x1]
  %v892 = vlaneseq
  %v893 = vshrl.u32 %v892, 7
  %v894 = vsub.s32 0, %v893
  %v895 = vrot.slane %v890, %v894
  %v897 = vmul.f32 %v888, %v895
  %v898 = vmul.f32 %v889, %v895
  %899 = vadd.xlane.f32.xlu0 %v897
  %v900 = vpop.xlane.xlu0 %899
  %901 = vadd.xlane.f32.xlu0 %v898
  %v902 = vpop.xlane.xlu0 %901
  %v903 = vld [vmem:[#allocation3] sm:$0x1]
  %v905 = vlaneseq
  %v906 = vshrl.u32 %v905, 7
  %v907 = vsub.s32 0, %v906
  %v908 = vrot.slane %v903, %v907
  %909 = vset.pattern.permute.xlu0 0
  %910 = vperm.xlu0 %909, %v908
  %v911 = vpop.permute.xlu0 %910
  %v913 = vadd.f32 %v900, %v911
  %v914 = vadd.f32 %v902, %v911
  %v917 = vlaneseq
  %v918 = vshrl.u32 %v917, 7
  %v919 = vsub.s32 %v534, %v918
  %v920 = vrot.slane %v913, %v919
  %v921 = vlaneseq
  %v922 = vshrl.u32 %v921, 7
  %v923 = vsub.s32 %v534, %v922
  %v924 = vrot.slane %v914, %v923
  %v925 = vsel %vm543, %v924, %v920
  %v927 = vsel %vm546, %v925, -inf
  %928 = vmax.xlane.f32.xlu0 %v927
  %v929 = vpop.xlane.xlu0 %928
  %v931 = vlaneseq
  %v932 = vshrl.u32 %v931, 7
  %v933 = vsub.s32 0, %v932
  %v934 = vrot.slane %v929, %v933
  %v935 = vlaneseq
  %v936 = vshrl.u32 %v935, 7
  %v937 = vsub.s32 1, %v936
  %v938 = vrot.slane %v929, %v937
  %v941 = vsub.f32 %v913, %v934
  %v942 = vsub.f32 %v914, %v938
  %v943 = vmul.f32 %v941, 1.442695
  %v944 = vpow.pop %v943
  %v945 = vmul.f32 %v942, 1.442695
  %v946 = vpow.pop %v945
  %949 = vset.pattern.permute.xlu0 0
  %950 = vperm.xlu0 %949, %v944
  %v951 = vpop.permute.xlu0 %950
  %952 = vset.pattern.permute.xlu0 0
  %953 = vperm.xlu0 %952, %v946
  %v954 = vpop.permute.xlu0 %953
  %v955 = vlaneseq
  %v956 = vshrl.u32 %v955, 7
  %v957 = vsub.s32 %v534, %v956
  %v958 = vrot.slane %v951, %v957
  %v959 = vlaneseq
  %v960 = vshrl.u32 %v959, 7
  %v961 = vsub.s32 %v534, %v960
  %v962 = vrot.slane %v954, %v961
  %v963 = vsel %vm543, %v962, %v958
  %v965 = vsel %vm546, %v963, 0.0
  %966 = vadd.xlane.f32.xlu0 %v965
  %v967 = vpop.xlane.xlu0 %966
  %v968 = vlog2.pop %v967
  %v969 = vmul.f32 %v968, 0.6931472
  %v971 = vlaneseq
  %v972 = vshrl.u32 %v971, 7
  %v973 = vsub.s32 0, %v972
  %v974 = vrot.slane %v969, %v973
  %v975 = vlaneseq
  %v976 = vshrl.u32 %v975, 7
  %v977 = vsub.s32 1, %v976
  %v978 = vrot.slane %v969, %v977
  %v981 = vsub.f32 %v941, %v974
  %v982 = vsub.f32 %v942, %v978
  %v983 = vld [vmem:[%s2] sm:$0x3]
  %v984 = vld [vmem:[%s3] sm:$0x3]
  %vm985 = vcmp.ge.s32.totalorder %v534, 1
  %vm986 = vcmp.eq.f32.partialorder %v983, 0.0
  %vm987 = vcmp.eq.f32.partialorder %v984, 0.0
  %v988 = vsel %vm987, 1, 0
  %989 = vset.pattern.permute.xlu0 0
  %990 = vperm.xlu0 %989, %v988
  %v991 = vpop.permute.xlu0 %990
  %vm992 = vcmp.eq.s32.totalorder %v991, 1
  %vm993 = vmor %vm986, %vm992
  %vm994 = vmand %vm985, %vm993
  %997 = vset.pattern.permute.xlu0 0
  %998 = vperm.xlu0 %997, %v981
  %v999 = vpop.permute.xlu0 %998
  %1000 = vset.pattern.permute.xlu0 0
  %1001 = vperm.xlu0 %1000, %v982
  %v1002 = vpop.permute.xlu0 %1001
  %v1003 = vlaneseq
  %v1004 = vshrl.u32 %v1003, 7
  %v1005 = vsub.s32 %v534, %v1004
  %v1006 = vrot.slane %v999, %v1005
  %v1007 = vlaneseq
  %v1008 = vshrl.u32 %v1007, 7
  %v1009 = vsub.s32 %v534, %v1008
  %v1010 = vrot.slane %v1002, %v1009
  %v1011 = vsel %vm543, %v1010, %v1006
  %v1013 = vsel %vm994, -inf, %v1011
  %1014 = vst.msk [vmem:[%s16] sm:$0x3] %vm546, %v1013
  // Predicated region
  $region66: #{attention_forward.1} parent=0 // pred_check
    _
  $region67: #{attention_forward.1} parent=0 // pred_check_branch
    %1016 = sbr.rel (0) target = $region69
  $region68: #{attention_forward.1} parent=0 // pred_region
    _
  $region69: #{attention_forward.1} parent=0 // pred_fallthru
    _
  // Predicated region
  $region70: #{attention_forward.1} parent=0 // pred_check
    _
  $region71: #{attention_forward.1} parent=0 // pred_check_branch
    %1018 = sbr.rel (0) target = $region73
  $region72: #{attention_forward.1} parent=0 // pred_region
    _
  $region73: #{attention_forward.1} parent=0 // pred_fallthru
    _

</llo_original>
